<compile_context>
chip_gen: v7x
topology: tpu7x:2x2x1
jax: 0.10.0
libtpu: 0.0.40
codegen_flags: <defaults>
</compile_context>

<pallas_src>
import functools
import math

import jax
import jax.numpy as jnp
from jax.experimental import pallas as pl
from jax.experimental.pallas import tpu as pltpu


def _round_up(x, m):
    return (x + m - 1) // m * m


def _noise_math(f, bits1, bits2, *, use_mul, use_add,
                mul_mean, mul_std, add_mean, add_std):
    """Shared math: Box-Muller normals from raw uint32 bits + noise apply.

    Used by both the Pallas kernel (on loaded tiles) and the pure-JAX
    reference, so they are numerically identical up to transcendental impl.
    """
    f32 = f.astype(jnp.float32)

    # uint32 -> uniform in (0, 1). Top 24 bits; +0.5 keeps u1 strictly
    # positive (safe for log). u2 only feeds cos/sin, no guard needed.
    u1 = ((bits1 >> 8).astype(jnp.float32) + 0.5) * (1.0 / (1 << 24))
    u2 = (bits2 >> 8).astype(jnp.float32) * (1.0 / (1 << 24))

    r = jnp.sqrt(-2.0 * jnp.log(u1))
    theta = (2.0 * jnp.pi) * u2

    out = f32
    if use_mul:
        m_mul = mul_std * (r * jnp.cos(theta))
        if mul_mean != 0.0:
            m_mul = m_mul + mul_mean
        out = out + f32 * m_mul          # f += f * m_mul
    if use_add:
        m_add = add_std * (r * jnp.sin(theta))
        if add_mean != 0.0:
            m_add = m_add + add_mean
        out = out + m_add                # f += m_add
    return out.astype(f.dtype)


def _recurrent_noise_kernel(f_ref, b1_ref, b2_ref, o_ref, *,
                            use_mul, use_add,
                            mul_mean, mul_std, add_mean, add_std):
    o_ref[...] = _noise_math(
        f_ref[...], b1_ref[...], b2_ref[...],
        use_mul=use_mul, use_add=use_add,
        mul_mean=mul_mean, mul_std=mul_std,
        add_mean=add_mean, add_std=add_std)


def _plan_layout(total, block_rows):
    """Pick a lane-dense (rows, lane) slab and a row-tile size."""
    lane = 128
    for cand in (512, 256):
        if total >= 8 * cand:
            lane = cand
            break
    rows_raw = pl.cdiv(total, lane)
    block_rows = max(8, block_rows - block_rows % 8)
    tm = min(block_rows, _round_up(rows_raw, 8))   # multiple of 8
    rows = _round_up(rows_raw, tm)                 # rows % tm == 0
    return lane, rows, tm


def _prepare_inputs(f, key, lane, rows):
    """Flatten + zero-pad f to (rows, lane); draw matching uint32 bit fields."""
    total = math.prod(f.shape)
    padded = rows * lane
    f_flat = f.reshape(-1)
    if padded != total:
        f_flat = jnp.pad(f_flat, (0, padded - total))
    f2 = f_flat.reshape(rows, lane)

    k1, k2 = jax.random.split(key)
    bits1 = jax.random.bits(k1, (rows, lane), dtype=jnp.uint32)
    bits2 = jax.random.bits(k2, (rows, lane), dtype=jnp.uint32)
    return f2, bits1, bits2


def recurrent_noise_forward(f, key, *,
                            use_mul=False, use_add=False,
                            mul_mean=0.0, mul_std=0.05,
                            add_mean=0.0, add_std=0.05,
                            recurrent=False, start_step=0,
                            step=0, training=True,
                            block_rows=1024):
    """Pallas implementation of RecurrentNoise.forward.

    `key` is a jax.random key. Non-recurrent mode: pass a fresh key per call.
    Recurrent mode: reuse the same key (same noise mask every call).
    """
    # TODO(synk): the module's persistent registered buffers (m_mul/m_add) have
    # no Pallas-side state; recurrent mode is emulated by reusing `key`.
    del recurrent

    # Identity paths (no noise applied) — pure wrapper logic, like the module.
    if step < start_step or not training:
        return f
    if not (use_mul or use_add):
        return f

    orig_shape = f.shape
    total = math.prod(orig_shape)
    lane, rows, tm = _plan_layout(total, block_rows)
    f2, bits1, bits2 = _prepare_inputs(f, key, lane, rows)

    kernel = functools.partial(
        _recurrent_noise_kernel,
        use_mul=bool(use_mul), use_add=bool(use_add),
        mul_mean=float(mul_mean), mul_std=float(mul_std),
        add_mean=float(add_mean), add_std=float(add_std))

    blk = lambda i: (i, 0)
    out2 = pl.pallas_call(
        kernel,
        out_shape=jax.ShapeDtypeStruct((rows, lane), f.dtype),
        grid=(rows // tm,),
        in_specs=[pl.BlockSpec((tm, lane), blk),
                  pl.BlockSpec((tm, lane), blk),
                  pl.BlockSpec((tm, lane), blk)],
        out_specs=pl.BlockSpec((tm, lane), blk),
        input_output_aliases={0: 0},   # write noise in place over f2
        compiler_params=pltpu.CompilerParams(
            dimension_semantics=("parallel",),
            vmem_limit_bytes=48 * 1024 * 1024),
    )(f2, bits1, bits2)

    out_flat = out2.reshape(-1)
    if rows * lane != total:
        out_flat = out_flat[:total]
    return out_flat.reshape(orig_shape)


def _reference_forward(f, key, *, use_mul, use_add,
                       mul_mean, mul_std, add_mean, add_std,
                       block_rows=1024):
    """Pure-JAX reference mirroring the kernel's layout and math exactly."""
    orig_shape = f.shape
    total = math.prod(orig_shape)
    lane, rows, _ = _plan_layout(total, block_rows)
    f2, bits1, bits2 = _prepare_inputs(f, key, lane, rows)
    out2 = _noise_math(f2, bits1, bits2,
                       use_mul=use_mul, use_add=use_add,
                       mul_mean=mul_mean, mul_std=mul_std,
                       add_mean=add_mean, add_std=add_std)
    out_flat = out2.reshape(-1)
    if rows * lane != total:
        out_flat = out_flat[:total]
    return out_flat.reshape(orig_shape)


if __name__ == "__main__":
    key = jax.random.PRNGKey(0)
    kx, knoise = jax.random.split(key)
    x = jax.random.normal(kx, (2, 4, 16, 16), dtype=jnp.float32)  # NCHW

    params = dict(use_mul=True, use_add=True,
                  mul_mean=0.0, mul_std=0.05,
                  add_mean=0.0, add_std=0.05)

    # Training path, both noises enabled.
    y = recurrent_noise_forward(x, knoise, **params,
                                start_step=0, step=0, training=True)
    y = jax.block_until_ready(y)

    assert y.shape == x.shape and y.dtype == x.dtype
    assert bool(jnp.all(jnp.isfinite(y)))
    # Noise of std 0.05 around the input: close but not equal.
    assert bool(jnp.any(y != x))
    assert float(jnp.max(jnp.abs(y - x))) < 2.0

    # Matches the pure-JAX reference (same bits, same math).
    y_ref = _reference_forward(x, knoise, **params)
    assert bool(jnp.allclose(y, y_ref, atol=1e-3, rtol=1e-3))

    # Recurrent mode (same key) -> identical mask -> identical output.
    y_again = recurrent_noise_forward(x, knoise, **params,
                                      recurrent=True, training=True)
    assert bool(jnp.all(y_again == y))

    # Eval / pre-start-step path is an exact identity.
    y_eval = recurrent_noise_forward(x, knoise, **params, training=False)
    assert bool(jnp.all(y_eval == x))
    y_pre = recurrent_noise_forward(x, knoise, **params,
                                    start_step=10, step=0, training=True)
    assert bool(jnp.all(y_pre == x))

    print("KERNEL_OK")
</pallas_src>

<mosaic_0001>
module attributes {stable_mosaic.version = 11 : i64} {
  func.func @_recurrent_noise_kernel(%arg0: i32, %arg1: memref<8x256xf32, #tpu.memory_space<vmem>>, %arg2: memref<8x256xi32, #tpu.memory_space<vmem>>, %arg3: memref<8x256xi32, #tpu.memory_space<vmem>>, %arg4: memref<8x256xf32, #tpu.memory_space<vmem>>) attributes {dimension_semantics = [#tpu.dimension_semantics<parallel>], iteration_bounds = array<i64: 1>, scalar_prefetch = 0 : i64, scratch_operands = 0 : i64, tpu.core_type = #tpu.core_type<tc>, window_params = [{transform_indices = @transform_0, window_bounds = array<i64: 8, 256>}, {transform_indices = @transform_1, window_bounds = array<i64: 8, 256>}, {transform_indices = @transform_2, window_bounds = array<i64: 8, 256>}, {transform_indices = @transform_3, window_bounds = array<i64: 8, 256>}]} {
    %c0 = arith.constant 0 : index
    %c0_0 = arith.constant 0 : index
    %0 = vector.load %arg1[%c0, %c0_0] : memref<8x256xf32, #tpu.memory_space<vmem>>, vector<8x256xf32>
    %c0_1 = arith.constant 0 : index
    %c0_2 = arith.constant 0 : index
    %1 = vector.load %arg2[%c0_1, %c0_2] : memref<8x256xi32, #tpu.memory_space<vmem>>, vector<8x256xi32>
    %c0_3 = arith.constant 0 : index
    %c0_4 = arith.constant 0 : index
    %2 = vector.load %arg3[%c0_3, %c0_4] : memref<8x256xi32, #tpu.memory_space<vmem>>, vector<8x256xi32>
    %c8_i32 = arith.constant 8 : i32
    %3 = vector.broadcast %c8_i32 : i32 to vector<8x256xi32>
    %4 = arith.shrui %1, %3 : vector<8x256xi32>
    %5 = arith.uitofp %4 : vector<8x256xi32> to vector<8x256xf32>
    %cst = arith.constant 5.000000e-01 : f32
    %6 = vector.broadcast %cst : f32 to vector<8x256xf32>
    %7 = arith.addf %5, %6 : vector<8x256xf32>
    %cst_5 = arith.constant 5.96046448E-8 : f32
    %8 = vector.broadcast %cst_5 : f32 to vector<8x256xf32>
    %9 = arith.mulf %7, %8 : vector<8x256xf32>
    %c8_i32_6 = arith.constant 8 : i32
    %10 = vector.broadcast %c8_i32_6 : i32 to vector<8x256xi32>
    %11 = arith.shrui %2, %10 : vector<8x256xi32>
    %12 = arith.uitofp %11 : vector<8x256xi32> to vector<8x256xf32>
    %cst_7 = arith.constant 5.96046448E-8 : f32
    %13 = vector.broadcast %cst_7 : f32 to vector<8x256xf32>
    %14 = arith.mulf %12, %13 : vector<8x256xf32>
    %15 = math.log %9 : vector<8x256xf32>
    %cst_8 = arith.constant -2.000000e+00 : f32
    %16 = vector.broadcast %cst_8 : f32 to vector<8x256xf32>
    %17 = arith.mulf %16, %15 : vector<8x256xf32>
    %18 = math.sqrt %17 : vector<8x256xf32>
    %cst_9 = arith.constant 6.28318548 : f32
    %19 = vector.broadcast %cst_9 : f32 to vector<8x256xf32>
    %20 = arith.mulf %19, %14 : vector<8x256xf32>
    %21 = math.cos %20 : vector<8x256xf32>
    %22 = arith.mulf %18, %21 : vector<8x256xf32>
    %cst_10 = arith.constant 5.000000e-02 : f32
    %23 = vector.broadcast %cst_10 : f32 to vector<8x256xf32>
    %24 = arith.mulf %23, %22 : vector<8x256xf32>
    %25 = arith.mulf %0, %24 : vector<8x256xf32>
    %26 = arith.addf %0, %25 : vector<8x256xf32>
    %27 = math.sin %20 : vector<8x256xf32>
    %28 = arith.mulf %18, %27 : vector<8x256xf32>
    %cst_11 = arith.constant 5.000000e-02 : f32
    %29 = vector.broadcast %cst_11 : f32 to vector<8x256xf32>
    %30 = arith.mulf %29, %28 : vector<8x256xf32>
    %31 = arith.addf %26, %30 : vector<8x256xf32>
    %c0_12 = arith.constant 0 : index
    %c0_13 = arith.constant 0 : index
    %32 = vector.load %arg4[%c0_12, %c0_13] : memref<8x256xf32, #tpu.memory_space<vmem>>, vector<8x256xf32>
    tpu.vector_store %arg4[%c0_12, %c0_13], %31 {strides = array<i32>} : memref<8x256xf32, #tpu.memory_space<vmem>>, vector<8x256xf32>,
    return
  }
  func.func @transform_0(%arg0: i32) -> (i32, i32) {
    %c0_i32 = arith.constant 0 : i32
    %c0_i32_0 = arith.constant 0 : i32
    return %arg0, %c0_i32 : i32, i32
  }
  func.func @transform_1(%arg0: i32) -> (i32, i32) {
    %c0_i32 = arith.constant 0 : i32
    %c0_i32_0 = arith.constant 0 : i32
    return %arg0, %c0_i32 : i32, i32
  }
  func.func @transform_2(%arg0: i32) -> (i32, i32) {
    %c0_i32 = arith.constant 0 : i32
    %c0_i32_0 = arith.constant 0 : i32
    return %arg0, %c0_i32 : i32, i32
  }
  func.func @transform_3(%arg0: i32) -> (i32, i32) {
    %c0_i32 = arith.constant 0 : i32
    %c0_i32_0 = arith.constant 0 : i32
    return %arg0, %c0_i32 : i32, i32
  }
}

</mosaic_0001>

<llo_original>
// kernel: tpu_custom_call.1
$region0: #{tpu_custom_call.1}
  #allocation0 [shape = 'u32[]', space=smem, size = 0x4, offset = 0x4, fixed_abs, tag = 'smem constant byte address 0x4 - core index']
  #allocation1 [shape = 'u32[144,128]{1,0:T(1,128)}', space=vmem, size = 0x12000, scoped, tag = 'internal scratch']
  %s0 = inlined_call_operand.hbm [shape: f32[8,256], index: 0, kind: input, shape index: {}, may-alias: {0,3}]
  %s1 = inlined_call_operand.vmem [shape: u32[8,256], index: 1, kind: input, shape index: {}]
  %s2 = inlined_call_operand.vmem [shape: u32[8,256], index: 2, kind: input, shape index: {}]
  %s3 = inlined_call_operand.hbm [shape: f32[8,256], index: 3, kind: output, shape index: {}, may-alias: {0,3}]
  %s4 = sld [smem:[#allocation0]]
  $region26: #{tpu_custom_call.1} parent=0
    _
  %s6 = ssub.s32 1, %s4
  %s7 = scalar_select 0, %s6, %s4
  $region1: #{tpu_custom_call.1} parent=0
    #allocation2 [shape = 'u8[8192]{0}', space=vmem, size = 0x2000, scoped, tag = 'input window, operand 0, single buffered']
    #allocation3 [shape = 's32[1]{0}', space=sflag, size = 0x4, scoped, tag = 'scoped memory for tpu_custom_call.1']
    #allocation4 [shape = 's32[1]{0}', space=sflag, size = 0x4, scoped, tag = 'scoped memory for tpu_custom_call.1']
    #allocation5 [shape = 'u8[8192]{0}', space=vmem, size = 0x2000, scoped, tag = 'output window, operand 0, single buffered']
    %8 = vsyncpa [#allocation3], 0
    %9 = vsyncpa [#allocation4], 0
    // Predicated region
    $region2: #{tpu_custom_call.1} parent=1 // pred_check
      _
    $region3: #{tpu_custom_call.1} parent=1 // pred_check_branch
      %11 = sbr.rel (0) target = $region5
    $region4: #{tpu_custom_call.1} parent=1 // pred_region
      %s13 = ssub.s32 256, 256
      %14 = vsyncadd [#allocation3], %s13
      %s16 = sshll.u32 [#allocation2], 4
      %s17 = int_to_ptr.vmem [resolvable:$true] %s16
      %19 = dma.hbm_to_vmem [thread:$0]  %s0, 256, %s17, [#allocation3]
    $region5: #{tpu_custom_call.1} parent=1 // pred_fallthru
      _
    // Predicated region
    $region6: #{tpu_custom_call.1} parent=1 // pred_check
      _
    $region7: #{tpu_custom_call.1} parent=1 // pred_check_branch
      %21 = sbr.rel (0) target = $region9
    $region8: #{tpu_custom_call.1} parent=1 // pred_region
      _
    $region9: #{tpu_custom_call.1} parent=1 // pred_fallthru
      _
    // Predicated region
    $region10: #{tpu_custom_call.1} parent=1 // pred_check
      _
    $region11: #{tpu_custom_call.1} parent=1 // pred_check_branch
      %23 = sbr.rel (0) target = $region13
    $region12: #{tpu_custom_call.1} parent=1 // pred_region
      _
    $region13: #{tpu_custom_call.1} parent=1 // pred_fallthru
      _
    // Predicated region
    $region14: #{tpu_custom_call.1} parent=1 // pred_check
      _
    $region15: #{tpu_custom_call.1} parent=1 // pred_check_branch
      %25 = sbr.rel (0) target = $region17
    $region16: #{tpu_custom_call.1} parent=1 // pred_region
      %26 = dma.done [#allocation3], 256
    $region17: #{tpu_custom_call.1} parent=1 // pred_fallthru
      _
    %v27 = vld [vmem:[#allocation2] sm:$0xff]
    %v28 = vld [vmem:[#allocation2 + $0x8] sm:$0xff]
    %v29 = vld [vmem:[%s1] sm:$0xff]
    %v30 = vld [vmem:[%s1 + $0x8] sm:$0xff]
    %v31 = vld [vmem:[%s2] sm:$0xff]
    %v32 = vld [vmem:[%s2 + $0x8] sm:$0xff]
    %v33 = vshrl.u32 %v29, 8
    %v34 = vshrl.u32 %v30, 8
    %v35 = vshrl.u32 %v33, 16
    %v36 = vand.u32 %v33, 65535
    %v37 = vcvt.s32.f32 %v35
    %v38 = vmul.f32 %v37, 65536.0
    %v39 = vcvt.s32.f32 %v36
    %v40 = vadd.f32 %v38, %v39
    %v41 = vshrl.u32 %v34, 16
    %v42 = vand.u32 %v34, 65535
    %v43 = vcvt.s32.f32 %v41
    %v44 = vmul.f32 %v43, 65536.0
    %v45 = vcvt.s32.f32 %v42
    %v46 = vadd.f32 %v44, %v45
    %v47 = vadd.f32 %v40, 0.5
    %v48 = vadd.f32 %v46, 0.5
    %v49 = vmul.f32 %v47, 5.9604645e-08
    %v50 = vmul.f32 %v48, 5.9604645e-08
    %v51 = vshrl.u32 %v31, 8
    %v52 = vshrl.u32 %v32, 8
    %v53 = vshrl.u32 %v51, 16
    %v54 = vand.u32 %v51, 65535
    %v55 = vcvt.s32.f32 %v53
    %v56 = vmul.f32 %v55, 65536.0
    %v57 = vcvt.s32.f32 %v54
    %v58 = vadd.f32 %v56, %v57
    %v59 = vshrl.u32 %v52, 16
    %v60 = vand.u32 %v52, 65535
    %v61 = vcvt.s32.f32 %v59
    %v62 = vmul.f32 %v61, 65536.0
    %v63 = vcvt.s32.f32 %v60
    %v64 = vadd.f32 %v62, %v63
    %v65 = vmul.f32 %v58, 5.9604645e-08
    %v66 = vmul.f32 %v64, 5.9604645e-08
    %v67 = vlog2.pop %v49
    %v68 = vmul.f32 %v67, 0.6931472
    %v69 = vlog2.pop %v50
    %v70 = vmul.f32 %v69, 0.6931472
    %v71 = vmul.f32 %v68, -2.0
    %v72 = vmul.f32 %v70, -2.0
    %v73 = vrsqrt.pop %v71
    %v74 = vmul.f32 %v71, %v73
    %vm75 = vcmp.eq.f32.partialorder %v71, inf
    %v76 = vsel %vm75, %v71, %v74
    %vm77 = vcmp.eq.f32.partialorder %v71, 0.0
    %v78 = vand.u32 %v71, 2147483648
    %v79 = vsel %vm77, %v78, %v76
    %v80 = vrsqrt.pop %v72
    %v81 = vmul.f32 %v72, %v80
    %vm82 = vcmp.eq.f32.partialorder %v72, inf
    %v83 = vsel %vm82, %v72, %v81
    %vm84 = vcmp.eq.f32.partialorder %v72, 0.0
    %v85 = vand.u32 %v72, 2147483648
    %v86 = vsel %vm84, %v85, %v83
    %v87 = vmul.f32 %v65, 6.2831855
    %v88 = vmul.f32 %v66, 6.2831855
    %v89 = vand.u32 2147483647, %v87
    %vm90 = vcmp.le.f32.partialorder %v89, 0.7853982
    %vm91 = vcmp.lt.s32.totalorder %v87, 0
    %v92 = vand.u32 %v87, 2139095040
    %v93 = vshrl.u32 %v92, 23
    %v94 = vsub.s32 %v93, 127
    %v95 = vand.u32 2147483647, %v87
    %v96 = vand.u32 %v95, 8388607
    %v97 = vor.u32 %v96, 8388608
    %v98 = vsub.s32 0, %v97
    %v99 = vadd.s32 %v94, 1
    %vm100 = vcmp.gt.s32.totalorder %v99, 0
    %v101 = vsel %vm100, %v99, 0
    %v102 = vshrl.u32 %v101, 5
    %v103 = vand.u32 %v101, 31
    %v104 = vsub.s32 32, %v103
    %v105 = vshrl.u32 683565275, %v104
    %v106 = vshll.u32 683565275, %v103
    %v107 = vshrl.u32 2475754826, %v104
    %v108 = vor.u32 %v106, %v107
    %v109 = vshll.u32 2475754826, %v103
    %v110 = vshrl.u32 2131351028, %v104
    %v111 = vor.u32 %v109, %v110
    %v112 = vshll.u32 2131351028, %v103
    %v113 = vshrl.u32 2102212464, %v104
    %v114 = vor.u32 %v112, %v113
    %v115 = vshll.u32 2102212464, %v103
    %v116 = vshrl.u32 920167782, %v104
    %v117 = vor.u32 %v115, %v116
    %v118 = vshll.u32 920167782, %v103
    %v119 = vshrl.u32 1326507024, %v104
    %v120 = vor.u32 %v118, %v119
    %vm121 = vcmp.lt.s32.totalorder %v102, 1
    %vm122 = vcmp.lt.s32.totalorder %v102, 2
    %vm123 = vcmp.lt.s32.totalorder %v102, 3
    %vm124 = vcmp.lt.s32.totalorder %v102, 4
    %v125 = vsel %vm121, %v105, %v108
    %v126 = vsel %vm124, %v114, 2102212464
    %v127 = vsel %vm123, %v111, %v126
    %v128 = vsel %vm122, %v125, %v127
    %v129 = vsel %vm121, %v108, %v111
    %v130 = vsel %vm124, %v117, 920167782
    %v131 = vsel %vm123, %v114, %v130
    %v132 = vsel %vm122, %v129, %v131
    %v133 = vsel %vm121, %v111, %v114
    %v134 = vsel %vm124, %v120, 1326507024
    %v135 = vsel %vm123, %v117, %v134
    %v136 = vsel %vm122, %v133, %v135
    %v137 = vshll.u32 %v97, 8
    %v138 = vmul.u32.u64.compose %v137, %v136
    %v139 = vextract.low.u32 %v138
    %v140 = vextract.high.u32 %v138
    %v141 = vmul.u32.u64.compose %v137, %v132
    %v142 = vextract.low.u32 %v141
    %v143 = vextract.high.u32 %v141
    %v144 = vmul.u32 %v137, %v128
    %v145 = vadd.s32 %v140, %v142
    %vm146 = vc.u32 %v140, %v142
    %v147 = vadd.s32 %v143, 1
    %v148 = vsel %vm146, %v147, %v143
    %v149 = vadd.s32 %v144, %v148
    %v150 = vadd.s32 %v149, 536870912
    %v151 = vshrl.u32 %v150, 30
    %v152 = vshll.u32 %v151, 30
    %v153 = vsub.s32 %v149, %v152
    %vm154 = vcmp.lt.s32.totalorder %v153, 0
    %v155 = vsub.s32 0, %v153
    %v156 = vsel %vm154, %v155, %v153
    %v157 = vclz %v156
    %v158 = vsub.s32 %v157, 2
    %vm159 = vcmp.gt.s32.totalorder 0, %v158
    %v160 = vsel %vm159, 0, %v158
    %v161 = vsub.s32 32, %v160
    %v162 = vshll.u32 %v153, %v160
    %v163 = vshrl.u32 %v145, %v161
    %v164 = vor.u32 %v162, %v163
    %v165 = vsub.s32 4294967266, %v160
    %v166 = vadd.s32 %v165, 127
    %v167 = vshll.u32 %v166, 23
    %v168 = vor.u32 4788187, %v167
    %v169 = vand.u32 2147483647, %v168
    %v171 = vcvt.s32.f32 %v164
    %v172 = vmul.f32 %v171, %v169
    %v173 = vxor.u32 %v172, 2147483648
    %v174 = vsel %vm91, %v173, %v172
    %v175 = vsub.s32 4, %v151
    %v176 = vsel %vm91, %v175, %v151
    %v177 = vsel %vm90, %v87, %v174
    %v178 = vsel %vm90, 0, %v176
    %v179 = vcosq.f32.pop %v177
    %v180 = vsinq.f32.pop %v177
    %vm181 = vweird.f32 %v87
    %v182 = vand.u32 %v178, 3
    %vm183 = vcmp.lt.s32.totalorder %v182, 2
    %vm184 = vcmp.eq.s32.totalorder %v182, 0
    %v185 = vxor.u32 %v180, 2147483648
    %v186 = vsel %vm184, %v179, %v185
    %vm187 = vcmp.eq.s32.totalorder %v182, 2
    %v188 = vxor.u32 %v179, 2147483648
    %v189 = vsel %vm187, %v188, %v180
    %v190 = vsel %vm183, %v186, %v189
    %v191 = vsel %vm181, nan, %v190
    %v192 = vand.u32 2147483647, %v88
    %vm193 = vcmp.le.f32.partialorder %v192, 0.7853982
    %vm194 = vcmp.lt.s32.totalorder %v88, 0
    %v195 = vand.u32 %v88, 2139095040
    %v196 = vshrl.u32 %v195, 23
    %v197 = vsub.s32 %v196, 127
    %v198 = vand.u32 2147483647, %v88
    %v199 = vand.u32 %v198, 8388607
    %v200 = vor.u32 %v199, 8388608
    %v201 = vsub.s32 0, %v200
    %v202 = vadd.s32 %v197, 1
    %vm203 = vcmp.gt.s32.totalorder %v202, 0
    %v204 = vsel %vm203, %v202, 0
    %v205 = vshrl.u32 %v204, 5
    %v206 = vand.u32 %v204, 31
    %v207 = vsub.s32 32, %v206
    %v208 = vshrl.u32 683565275, %v207
    %v209 = vshll.u32 683565275, %v206
    %v210 = vshrl.u32 2475754826, %v207
    %v211 = vor.u32 %v209, %v210
    %v212 = vshll.u32 2475754826, %v206
    %v213 = vshrl.u32 2131351028, %v207
    %v214 = vor.u32 %v212, %v213
    %v215 = vshll.u32 2131351028, %v206
    %v216 = vshrl.u32 2102212464, %v207
    %v217 = vor.u32 %v215, %v216
    %v218 = vshll.u32 2102212464, %v206
    %v219 = vshrl.u32 920167782, %v207
    %v220 = vor.u32 %v218, %v219
    %v221 = vshll.u32 920167782, %v206
    %v222 = vshrl.u32 1326507024, %v207
    %v223 = vor.u32 %v221, %v222
    %vm224 = vcmp.lt.s32.totalorder %v205, 1
    %vm225 = vcmp.lt.s32.totalorder %v205, 2
    %vm226 = vcmp.lt.s32.totalorder %v205, 3
    %vm227 = vcmp.lt.s32.totalorder %v205, 4
    %v228 = vsel %vm224, %v208, %v211
    %v229 = vsel %vm227, %v217, 2102212464
    %v230 = vsel %vm226, %v214, %v229
    %v231 = vsel %vm225, %v228, %v230
    %v232 = vsel %vm224, %v211, %v214
    %v233 = vsel %vm227, %v220, 920167782
    %v234 = vsel %vm226, %v217, %v233
    %v235 = vsel %vm225, %v232, %v234
    %v236 = vsel %vm224, %v214, %v217
    %v237 = vsel %vm227, %v223, 1326507024
    %v238 = vsel %vm226, %v220, %v237
    %v239 = vsel %vm225, %v236, %v238
    %v240 = vshll.u32 %v200, 8
    %v241 = vmul.u32.u64.compose %v240, %v239
    %v242 = vextract.low.u32 %v241
    %v243 = vextract.high.u32 %v241
    %v244 = vmul.u32.u64.compose %v240, %v235
    %v245 = vextract.low.u32 %v244
    %v246 = vextract.high.u32 %v244
    %v247 = vmul.u32 %v240, %v231
    %v248 = vadd.s32 %v243, %v245
    %vm249 = vc.u32 %v243, %v245
    %v250 = vadd.s32 %v246, 1
    %v251 = vsel %vm249, %v250, %v246
    %v252 = vadd.s32 %v247, %v251
    %v253 = vadd.s32 %v252, 536870912
    %v254 = vshrl.u32 %v253, 30
    %v255 = vshll.u32 %v254, 30
    %v256 = vsub.s32 %v252, %v255
    %vm257 = vcmp.lt.s32.totalorder %v256, 0
    %v258 = vsub.s32 0, %v256
    %v259 = vsel %vm257, %v258, %v256
    %v260 = vclz %v259
    %v261 = vsub.s32 %v260, 2
    %vm262 = vcmp.gt.s32.totalorder 0, %v261
    %v263 = vsel %vm262, 0, %v261
    %v264 = vsub.s32 32, %v263
    %v265 = vshll.u32 %v256, %v263
    %v266 = vshrl.u32 %v248, %v264
    %v267 = vor.u32 %v265, %v266
    %v268 = vsub.s32 4294967266, %v263
    %v269 = vadd.s32 %v268, 127
    %v270 = vshll.u32 %v269, 23
    %v271 = vor.u32 4788187, %v270
    %v272 = vand.u32 2147483647, %v271
    %v274 = vcvt.s32.f32 %v267
    %v275 = vmul.f32 %v274, %v272
    %v276 = vxor.u32 %v275, 2147483648
    %v277 = vsel %vm194, %v276, %v275
    %v278 = vsub.s32 4, %v254
    %v279 = vsel %vm194, %v278, %v254
    %v280 = vsel %vm193, %v88, %v277
    %v281 = vsel %vm193, 0, %v279
    %v282 = vcosq.f32.pop %v280
    %v283 = vsinq.f32.pop %v280
    %vm284 = vweird.f32 %v88
    %v285 = vand.u32 %v281, 3
    %vm286 = vcmp.lt.s32.totalorder %v285, 2
    %vm287 = vcmp.eq.s32.totalorder %v285, 0
    %v288 = vxor.u32 %v283, 2147483648
    %v289 = vsel %vm287, %v282, %v288
    %vm290 = vcmp.eq.s32.totalorder %v285, 2
    %v291 = vxor.u32 %v282, 2147483648
    %v292 = vsel %vm290, %v291, %v283
    %v293 = vsel %vm286, %v289, %v292
    %v294 = vsel %vm284, nan, %v293
    %v295 = vmul.f32 %v79, %v191
    %v296 = vmul.f32 %v86, %v294
    %v297 = vmul.f32 %v295, 0.05
    %v298 = vmul.f32 %v296, 0.05
    %v299 = vmul.f32 %v27, %v297
    %v300 = vmul.f32 %v28, %v298
    %v301 = vadd.f32 %v27, %v299
    %v302 = vadd.f32 %v28, %v300
    %v303 = vand.u32 2147483647, %v87
    %vm304 = vcmp.le.f32.partialorder %v303, 0.7853982
    %vm305 = vcmp.lt.s32.totalorder %v87, 0
    %v306 = vand.u32 %v87, 2139095040
    %v307 = vshrl.u32 %v306, 23
    %v308 = vsub.s32 %v307, 127
    %v309 = vand.u32 2147483647, %v87
    %v310 = vand.u32 %v309, 8388607
    %v311 = vor.u32 %v310, 8388608
    %v312 = vsub.s32 0, %v311
    %v313 = vadd.s32 %v308, 1
    %vm314 = vcmp.gt.s32.totalorder %v313, 0
    %v315 = vsel %vm314, %v313, 0
    %v316 = vshrl.u32 %v315, 5
    %v317 = vand.u32 %v315, 31
    %v318 = vsub.s32 32, %v317
    %v319 = vshrl.u32 683565275, %v318
    %v320 = vshll.u32 683565275, %v317
    %v321 = vshrl.u32 2475754826, %v318
    %v322 = vor.u32 %v320, %v321
    %v323 = vshll.u32 2475754826, %v317
    %v324 = vshrl.u32 2131351028, %v318
    %v325 = vor.u32 %v323, %v324
    %v326 = vshll.u32 2131351028, %v317
    %v327 = vshrl.u32 2102212464, %v318
    %v328 = vor.u32 %v326, %v327
    %v329 = vshll.u32 2102212464, %v317
    %v330 = vshrl.u32 920167782, %v318
    %v331 = vor.u32 %v329, %v330
    %v332 = vshll.u32 920167782, %v317
    %v333 = vshrl.u32 1326507024, %v318
    %v334 = vor.u32 %v332, %v333
    %vm335 = vcmp.lt.s32.totalorder %v316, 1
    %vm336 = vcmp.lt.s32.totalorder %v316, 2
    %vm337 = vcmp.lt.s32.totalorder %v316, 3
    %vm338 = vcmp.lt.s32.totalorder %v316, 4
    %v339 = vsel %vm335, %v319, %v322
    %v340 = vsel %vm338, %v328, 2102212464
    %v341 = vsel %vm337, %v325, %v340
    %v342 = vsel %vm336, %v339, %v341
    %v343 = vsel %vm335, %v322, %v325
    %v344 = vsel %vm338, %v331, 920167782
    %v345 = vsel %vm337, %v328, %v344
    %v346 = vsel %vm336, %v343, %v345
    %v347 = vsel %vm335, %v325, %v328
    %v348 = vsel %vm338, %v334, 1326507024
    %v349 = vsel %vm337, %v331, %v348
    %v350 = vsel %vm336, %v347, %v349
    %v351 = vshll.u32 %v311, 8
    %v352 = vmul.u32.u64.compose %v351, %v350
    %v353 = vextract.low.u32 %v352
    %v354 = vextract.high.u32 %v352
    %v355 = vmul.u32.u64.compose %v351, %v346
    %v356 = vextract.low.u32 %v355
    %v357 = vextract.high.u32 %v355
    %v358 = vmul.u32 %v351, %v342
    %v359 = vadd.s32 %v354, %v356
    %vm360 = vc.u32 %v354, %v356
    %v361 = vadd.s32 %v357, 1
    %v362 = vsel %vm360, %v361, %v357
    %v363 = vadd.s32 %v358, %v362
    %v364 = vadd.s32 %v363, 536870912
    %v365 = vshrl.u32 %v364, 30
    %v366 = vshll.u32 %v365, 30
    %v367 = vsub.s32 %v363, %v366
    %vm368 = vcmp.lt.s32.totalorder %v367, 0
    %v369 = vsub.s32 0, %v367
    %v370 = vsel %vm368, %v369, %v367
    %v371 = vclz %v370
    %v372 = vsub.s32 %v371, 2
    %vm373 = vcmp.gt.s32.totalorder 0, %v372
    %v374 = vsel %vm373, 0, %v372
    %v375 = vsub.s32 32, %v374
    %v376 = vshll.u32 %v367, %v374
    %v377 = vshrl.u32 %v359, %v375
    %v378 = vor.u32 %v376, %v377
    %v379 = vsub.s32 4294967266, %v374
    %v380 = vadd.s32 %v379, 127
    %v381 = vshll.u32 %v380, 23
    %v382 = vor.u32 4788187, %v381
    %v383 = vand.u32 2147483647, %v382
    %v385 = vcvt.s32.f32 %v378
    %v386 = vmul.f32 %v385, %v383
    %v387 = vxor.u32 %v386, 2147483648
    %v388 = vsel %vm305, %v387, %v386
    %v389 = vsub.s32 4, %v365
    %v390 = vsel %vm305, %v389, %v365
    %v391 = vsel %vm304, %v87, %v388
    %v392 = vsel %vm304, 0, %v390
    %v393 = vcosq.f32.pop %v391
    %v394 = vsinq.f32.pop %v391
    %vm395 = vweird.f32 %v87
    %v396 = vadd.s32 %v392, 3
    %v397 = vand.u32 %v396, 3
    %vm398 = vcmp.lt.s32.totalorder %v397, 2
    %vm399 = vcmp.eq.s32.totalorder %v397, 0
    %v400 = vxor.u32 %v394, 2147483648
    %v401 = vsel %vm399, %v393, %v400
    %vm402 = vcmp.eq.s32.totalorder %v397, 2
    %v403 = vxor.u32 %v393, 2147483648
    %v404 = vsel %vm402, %v403, %v394
    %v405 = vsel %vm398, %v401, %v404
    %v406 = vsel %vm395, nan, %v405
    %v407 = vand.u32 2147483647, %v88
    %vm408 = vcmp.le.f32.partialorder %v407, 0.7853982
    %vm409 = vcmp.lt.s32.totalorder %v88, 0
    %v410 = vand.u32 %v88, 2139095040
    %v411 = vshrl.u32 %v410, 23
    %v412 = vsub.s32 %v411, 127
    %v413 = vand.u32 2147483647, %v88
    %v414 = vand.u32 %v413, 8388607
    %v415 = vor.u32 %v414, 8388608
    %v416 = vsub.s32 0, %v415
    %v417 = vadd.s32 %v412, 1
    %vm418 = vcmp.gt.s32.totalorder %v417, 0
    %v419 = vsel %vm418, %v417, 0
    %v420 = vshrl.u32 %v419, 5
    %v421 = vand.u32 %v419, 31
    %v422 = vsub.s32 32, %v421
    %v423 = vshrl.u32 683565275, %v422
    %v424 = vshll.u32 683565275, %v421
    %v425 = vshrl.u32 2475754826, %v422
    %v426 = vor.u32 %v424, %v425
    %v427 = vshll.u32 2475754826, %v421
    %v428 = vshrl.u32 2131351028, %v422
    %v429 = vor.u32 %v427, %v428
    %v430 = vshll.u32 2131351028, %v421
    %v431 = vshrl.u32 2102212464, %v422
    %v432 = vor.u32 %v430, %v431
    %v433 = vshll.u32 2102212464, %v421
    %v434 = vshrl.u32 920167782, %v422
    %v435 = vor.u32 %v433, %v434
    %v436 = vshll.u32 920167782, %v421
    %v437 = vshrl.u32 1326507024, %v422
    %v438 = vor.u32 %v436, %v437
    %vm439 = vcmp.lt.s32.totalorder %v420, 1
    %vm440 = vcmp.lt.s32.totalorder %v420, 2
    %vm441 = vcmp.lt.s32.totalorder %v420, 3
    %vm442 = vcmp.lt.s32.totalorder %v420, 4
    %v443 = vsel %vm439, %v423, %v426
    %v444 = vsel %vm442, %v432, 2102212464
    %v445 = vsel %vm441, %v429, %v444
    %v446 = vsel %vm440, %v443, %v445
    %v447 = vsel %vm439, %v426, %v429
    %v448 = vsel %vm442, %v435, 920167782
    %v449 = vsel %vm441, %v432, %v448
    %v450 = vsel %vm440, %v447, %v449
    %v451 = vsel %vm439, %v429, %v432
    %v452 = vsel %vm442, %v438, 1326507024
    %v453 = vsel %vm441, %v435, %v452
    %v454 = vsel %vm440, %v451, %v453
    %v455 = vshll.u32 %v415, 8
    %v456 = vmul.u32.u64.compose %v455, %v454
    %v457 = vextract.low.u32 %v456
    %v458 = vextract.high.u32 %v456
    %v459 = vmul.u32.u64.compose %v455, %v450
    %v460 = vextract.low.u32 %v459
    %v461 = vextract.high.u32 %v459
    %v462 = vmul.u32 %v455, %v446
    %v463 = vadd.s32 %v458, %v460
    %vm464 = vc.u32 %v458, %v460
    %v465 = vadd.s32 %v461, 1
    %v466 = vsel %vm464, %v465, %v461
    %v467 = vadd.s32 %v462, %v466
    %v468 = vadd.s32 %v467, 536870912
    %v469 = vshrl.u32 %v468, 30
    %v470 = vshll.u32 %v469, 30
    %v471 = vsub.s32 %v467, %v470
    %vm472 = vcmp.lt.s32.totalorder %v471, 0
    %v473 = vsub.s32 0, %v471
    %v474 = vsel %vm472, %v473, %v471
    %v475 = vclz %v474
    %v476 = vsub.s32 %v475, 2
    %vm477 = vcmp.gt.s32.totalorder 0, %v476
    %v478 = vsel %vm477, 0, %v476
    %v479 = vsub.s32 32, %v478
    %v480 = vshll.u32 %v471, %v478
    %v481 = vshrl.u32 %v463, %v479
    %v482 = vor.u32 %v480, %v481
    %v483 = vsub.s32 4294967266, %v478
    %v484 = vadd.s32 %v483, 127
    %v485 = vshll.u32 %v484, 23
    %v486 = vor.u32 4788187, %v485
    %v487 = vand.u32 2147483647, %v486
    %v489 = vcvt.s32.f32 %v482
    %v490 = vmul.f32 %v489, %v487
    %v491 = vxor.u32 %v490, 2147483648
    %v492 = vsel %vm409, %v491, %v490
    %v493 = vsub.s32 4, %v469
    %v494 = vsel %vm409, %v493, %v469
    %v495 = vsel %vm408, %v88, %v492
    %v496 = vsel %vm408, 0, %v494
    %v497 = vcosq.f32.pop %v495
    %v498 = vsinq.f32.pop %v495
    %vm499 = vweird.f32 %v88
    %v500 = vadd.s32 %v496, 3
    %v501 = vand.u32 %v500, 3
    %vm502 = vcmp.lt.s32.totalorder %v501, 2
    %vm503 = vcmp.eq.s32.totalorder %v501, 0
    %v504 = vxor.u32 %v498, 2147483648
    %v505 = vsel %vm503, %v497, %v504
    %vm506 = vcmp.eq.s32.totalorder %v501, 2
    %v507 = vxor.u32 %v497, 2147483648
    %v508 = vsel %vm506, %v507, %v498
    %v509 = vsel %vm502, %v505, %v508
    %v510 = vsel %vm499, nan, %v509
    %v511 = vmul.f32 %v79, %v406
    %v512 = vmul.f32 %v86, %v510
    %v513 = vmul.f32 %v511, 0.05
    %v514 = vmul.f32 %v512, 0.05
    %v515 = vadd.f32 %v301, %v513
    %v516 = vadd.f32 %v302, %v514
    %517 = vst [vmem:[#allocation5] sm:$0xff] %v515
    %518 = vst [vmem:[#allocation5 + $0x8] sm:$0xff] %v516
    // Predicated region
    $region18: #{tpu_custom_call.1} parent=1 // pred_check
      _
    $region19: #{tpu_custom_call.1} parent=1 // pred_check_branch
      %520 = sbr.rel (0) target = $region21
    $region20: #{tpu_custom_call.1} parent=1 // pred_region
      %s522 = ssub.s32 256, 256
      %523 = vsyncadd [#allocation4], %s522
      %s525 = sshll.u32 [#allocation5], 4
      %s526 = int_to_ptr.vmem [resolvable:$true] %s525
      %528 = dma.vmem_to_hbm [thread:$0]  %s526, 256, %s3, [#allocation4]
    $region21: #{tpu_custom_call.1} parent=1 // pred_fallthru
      _
    // Predicated region
    $region22: #{tpu_custom_call.1} parent=1 // pred_check
      _
    $region23: #{tpu_custom_call.1} parent=1 // pred_check_branch
      %530 = sbr.rel (0) target = $region25
    $region24: #{tpu_custom_call.1} parent=1 // pred_region
      %531 = dma.done [#allocation4], 256
    $region25: #{tpu_custom_call.1} parent=1 // pred_fallthru
      _
    %532 = vsyncpa [#allocation3], 1
    %533 = vsyncpa [#allocation4], 1

</llo_original>
